<compile_context>
chip_gen: v6e
topology: v6e:2x2x1
jax: 0.10.0
libtpu: 0.0.40
codegen_flags: <defaults>
</compile_context>

<pallas_src>
import jax
import jax.numpy as jnp
import numpy as np
from jax import lax
from jax.experimental import pallas as pl
from jax.experimental.pallas import tpu as pltpu

# Small, TPU-friendly hyperparameters consistent with the module's constructor.
DICT_SIZE = 50
INPUT_LEN = 16                      # L
NUM_CLASS = 4                       # C
FILTER_SIZES = (1, 2, 3, 4, 5)
NUM_FILTER = 128                    # F (lane aligned)
EMBED_SIZE = 32                     # E
BATCH = 2                           # B

NUM_SIZES = len(FILTER_SIZES)       # S
MAX_FS = max(FILTER_SIZES)
SF = NUM_SIZES * NUM_FILTER         # 640 stacked conv output columns
ROWS = BATCH * INPUT_LEN            # 32 rows (batch*time) fed to the MXU
ROWS_PAD = ROWS + 8                 # zero tail rows so shifted views stay in range (>= ROWS+MAX_FS-1)
DICT_PAD = 64                       # dict rows padded to a sublane multiple (extra rows are zero)
C_PAD = 128                         # class dim padded for a lane-dense output store
K_IM2COL = MAX_FS * EMBED_SIZE      # 160 im2col contraction width


def textcnn_kernel(tok_ref, emb_ref, wconv_ref, bconv_ref, valid_ref, wfc_ref, bfc_ref,
                   o_ref, emb_scr, lhs_scr):
    # 1) Embedding lookup: exact one-hot row-select on the MXU (no in-kernel gather).
    onehot = (tok_ref[...] ==
              lax.broadcasted_iota(jnp.int32, (ROWS, DICT_PAD), 1)).astype(jnp.float32)
    emb = jnp.dot(onehot, emb_ref[...], preferred_element_type=jnp.float32)      # (ROWS, E)
    # TODO(synk): nn.Dropout(0.5) is identity at inference; training-mode masking omitted.

    # 2) Stage emb in a zero-tailed VMEM scratch so shifted views never leave the buffer,
    #    then lay the MAX_FS shifted copies side by side as the im2col LHS (ROWS, 160).
    emb_scr[ROWS:ROWS_PAD, :] = jnp.zeros((ROWS_PAD - ROWS, EMBED_SIZE), jnp.float32)
    emb_scr[0:ROWS, :] = emb
    for k in range(MAX_FS):                                                      # static unroll
        lhs_scr[:, k * EMBED_SIZE:(k + 1) * EMBED_SIZE] = emb_scr[k:k + ROWS, :]

    # 3) All five Conv1d banks in ONE K=160 matmul (bf16 inputs, f32 accumulation).
    #    Taps k >= fs carry zero weights for that bank, so padded / cross-batch rows
    #    contribute exactly 0 to that bank's columns.
    conv = jnp.dot(lhs_scr[...].astype(jnp.bfloat16), wconv_ref[...],
                   preferred_element_type=jnp.float32)                           # (ROWS, SF)
    conv = jnp.maximum(conv + bconv_ref[...], 0.0)                               # bias + ReLU (f32)

    # 4) Max-pool over time.  Validity mask is built in-kernel from per-bank valid
    #    lengths (position t contributes iff t <= L - fs); post-ReLU values are >= 0 and
    #    every bank has >= 1 valid position, so zeroing invalid positions keeps the max exact.
    t_iota = lax.broadcasted_iota(jnp.int32, (INPUT_LEN, SF), 0)
    mask = (t_iota < valid_ref[...]).astype(jnp.float32)                         # (L, SF)
    conv3 = conv.reshape(BATCH, INPUT_LEN, SF)
    feats = jnp.max(conv3 * mask[None, :, :], axis=1)                            # (B, SF)

    # 5) FC with the class dim zero-padded to 128 -> lane-dense output store.
    logits = jnp.dot(feats.astype(jnp.bfloat16), wfc_ref[...],
                     preferred_element_type=jnp.float32) + bfc_ref[...]
    o_ref[...] = logits.astype(o_ref.dtype)


@jax.jit
def textcnn_forward(tokens, emb_pad, w_conv_pack, b_conv, valid_len, w_fc_pad, b_fc_pad):
    tok_col = tokens.reshape(ROWS, 1).astype(jnp.int32)          # row r = b*L + t
    logits_pad = pl.pallas_call(
        textcnn_kernel,
        out_shape=jax.ShapeDtypeStruct((BATCH, C_PAD), jnp.float32),
        in_specs=[pl.BlockSpec(memory_space=pltpu.MemorySpace.VMEM) for _ in range(7)],
        out_specs=pl.BlockSpec(memory_space=pltpu.MemorySpace.VMEM),
        scratch_shapes=[pltpu.VMEM((ROWS_PAD, EMBED_SIZE), jnp.float32),   # staged embeddings
                        pltpu.VMEM((ROWS, K_IM2COL), jnp.float32)],        # im2col LHS
        cost_estimate=pl.CostEstimate(flops=7_012_352, transcendentals=0,
                                      bytes_accessed=383_616),
    )(tok_col, emb_pad, w_conv_pack, b_conv, valid_len, w_fc_pad, b_fc_pad)
    return logits_pad[:, :NUM_CLASS]                              # (B, C)


def reference_forward(tokens, emb_table, w_list, b_list, w_fc, b_fc):
    """Pure-JAX mirror of the PyTorch forward (same bf16 weight/activation rounding)."""
    emb = emb_table[tokens].astype(jnp.bfloat16)                          # (B, L, E)
    pooled = []
    for s, fs in enumerate(FILTER_SIZES):
        w_bf = w_list[s].astype(jnp.bfloat16)                             # (F, E, fs)
        t_out = INPUT_LEN - fs + 1
        acc = jnp.zeros((BATCH, t_out, NUM_FILTER), jnp.float32)
        for k in range(fs):
            acc = acc + jnp.einsum('ble,fe->blf', emb[:, k:k + t_out, :], w_bf[:, :, k],
                                   preferred_element_type=jnp.float32)
        conv = jnp.maximum(acc + b_list[s][None, None, :], 0.0)           # (B, T_out, F)
        pooled.append(jnp.max(conv, axis=1))                              # (B, F)
    stacked = jnp.stack(pooled, axis=2)                                   # (B, F, S) == torch.cat(dim=2)
    flat = stacked.reshape(BATCH, -1)                                     # feature index f*S + s
    return (jnp.dot(flat.astype(jnp.bfloat16), w_fc.astype(jnp.bfloat16).T,
                    preferred_element_type=jnp.float32) + b_fc[None, :])


if __name__ == "__main__":
    keys = jax.random.split(jax.random.PRNGKey(0), 4 + 2 * NUM_SIZES)

    # Embedding (xavier_uniform_), zero-padded to DICT_PAD rows, kept f32 (tiny).
    xav = (6.0 / (DICT_SIZE + EMBED_SIZE)) ** 0.5
    emb_table = jax.random.uniform(keys[0], (DICT_SIZE, EMBED_SIZE), jnp.float32, -xav, xav)
    emb_pad = jnp.zeros((DICT_PAD, EMBED_SIZE), jnp.float32).at[:DICT_SIZE].set(emb_table)

    # Conv1d weights in PyTorch layout (F, E, fs) per size, packed once into a single
    # im2col weight matrix (MAX_FS*E, S*F); taps k >= fs stay zero for that bank.
    w_list, b_list = [], []
    w_conv_np = np.zeros((K_IM2COL, SF), np.float32)
    b_conv_np = np.zeros((1, SF), np.float32)
    for s, fs in enumerate(FILTER_SIZES):
        w_t = jax.random.normal(keys[4 + 2 * s], (NUM_FILTER, EMBED_SIZE, fs), jnp.float32) * 0.05
        b_t = jax.random.normal(keys[5 + 2 * s], (NUM_FILTER,), jnp.float32) * 0.05
        w_list.append(w_t)
        b_list.append(b_t)
        w_np = np.asarray(w_t)
        for k in range(fs):
            w_conv_np[k * EMBED_SIZE:(k + 1) * EMBED_SIZE,
                      s * NUM_FILTER:(s + 1) * NUM_FILTER] = w_np[:, :, k].T
        b_conv_np[0, s * NUM_FILTER:(s + 1) * NUM_FILTER] = np.asarray(b_t)
    w_conv_pack = jnp.asarray(w_conv_np).astype(jnp.bfloat16)   # bf16 weights, f32 accumulation
    b_conv = jnp.asarray(b_conv_np)                             # f32 bias

    # Per-bank valid time length (L - fs + 1); the pool mask is built from this in-kernel.
    valid_np = np.zeros((1, SF), np.int32)
    for s, fs in enumerate(FILTER_SIZES):
        valid_np[0, s * NUM_FILTER:(s + 1) * NUM_FILTER] = INPUT_LEN - fs + 1
    valid_len = jnp.asarray(valid_np)

    # Linear (nn.init.normal_ weight).  Permute columns from PyTorch's channel-major
    # feature order (f*S + s, from torch.cat(dim=2).view) to the kernel's size-major
    # order (s*F + f), transpose, zero-pad classes 4 -> 128, cast to bf16.
    w_fc = jax.random.normal(keys[1], (NUM_CLASS, NUM_FILTER * NUM_SIZES), jnp.float32)
    b_fc = jax.random.uniform(keys[2], (NUM_CLASS,), jnp.float32, -0.05, 0.05)
    w_fc_sm = w_fc.reshape(NUM_CLASS, NUM_FILTER, NUM_SIZES).transpose(0, 2, 1).reshape(NUM_CLASS, SF)
    w_fc_pad = (jnp.zeros((SF, C_PAD), jnp.float32).at[:, :NUM_CLASS].set(w_fc_sm.T)
                ).astype(jnp.bfloat16)
    b_fc_pad = jnp.zeros((1, C_PAD), jnp.float32).at[0, :NUM_CLASS].set(b_fc)

    tokens = jax.random.randint(keys[3], (BATCH, INPUT_LEN), 0, DICT_SIZE, dtype=jnp.int32)

    logits = textcnn_forward(tokens, emb_pad, w_conv_pack, b_conv, valid_len, w_fc_pad, b_fc_pad)
    jax.block_until_ready(logits)
    assert logits.shape == (BATCH, NUM_CLASS) and logits.dtype == jnp.float32

    # Correctness check against a straightforward pure-JAX port of the PyTorch forward
    # (same bf16 rounding points; loose tolerance only covers accumulation-order noise).
    ref = reference_forward(tokens, emb_table, w_list, b_list, w_fc, b_fc)
    np.testing.assert_allclose(np.asarray(logits), np.asarray(ref), rtol=5e-2, atol=5e-2)
    print("KERNEL_OK")
</pallas_src>

<mosaic_0001>
module attributes {stable_mosaic.version = 11 : i64} {
  func.func @textcnn_kernel(%arg0: memref<32x1xi32, #tpu.memory_space<vmem>>, %arg1: memref<64x32xf32, #tpu.memory_space<vmem>>, %arg2: memref<160x640xbf16, #tpu.memory_space<vmem>>, %arg3: memref<1x640xf32, #tpu.memory_space<vmem>>, %arg4: memref<1x640xi32, #tpu.memory_space<vmem>>, %arg5: memref<640x128xbf16, #tpu.memory_space<vmem>>, %arg6: memref<1x128xf32, #tpu.memory_space<vmem>>, %arg7: memref<2x128xf32, #tpu.memory_space<vmem>>, %arg8: memref<40x32xf32, #tpu.memory_space<vmem>>, %arg9: memref<32x160xf32, #tpu.memory_space<vmem>>) attributes {dimension_semantics = [], scalar_prefetch = 0 : i64, scratch_operands = 2 : i64, tpu.core_type = #tpu.core_type<tc>} {
    %c0 = arith.constant 0 : index
    %c0_0 = arith.constant 0 : index
    %0 = vector.load %arg0[%c0, %c0_0] : memref<32x1xi32, #tpu.memory_space<vmem>>, vector<32x1xi32>
    %1 = tpu.iota {dimensions = array<i32: 1>} : vector<32x64xi32>
    %2 = vector.broadcast %0 : vector<32x1xi32> to vector<32x64xi32>
    %3 = arith.cmpi eq, %2, %1 : vector<32x64xi32>
    %4 = arith.extui %3 : vector<32x64xi1> to vector<32x64xi32>
    %5 = arith.sitofp %4 : vector<32x64xi32> to vector<32x64xf32>
    %c0_1 = arith.constant 0 : index
    %c0_2 = arith.constant 0 : index
    %6 = vector.load %arg1[%c0_1, %c0_2] : memref<64x32xf32, #tpu.memory_space<vmem>>, vector<64x32xf32>
    %cst = arith.constant dense<0.000000e+00> : vector<32x32xf32>
    %7 = tpu.matmul %5, %6, %cst {dimension_numbers = #tpu.dot_dimension_numbers<[1], [0], [0], [1], [0, 0, 1, 1], [], []>} : vector<32x64xf32>, vector<64x32xf32>, vector<32x32xf32> -> vector<32x32xf32>
    %cst_3 = arith.constant 0.000000e+00 : f32
    %8 = vector.broadcast %cst_3 : f32 to vector<8x32xf32>
    %c32 = arith.constant 32 : index
    %c0_4 = arith.constant 0 : index
    %9 = vector.load %arg8[%c32, %c0_4] : memref<40x32xf32, #tpu.memory_space<vmem>>, vector<8x32xf32>
    tpu.vector_store %arg8[%c32, %c0_4], %8 {strides = array<i32>} : memref<40x32xf32, #tpu.memory_space<vmem>>, vector<8x32xf32>,
    %c0_5 = arith.constant 0 : index
    %c0_6 = arith.constant 0 : index
    %10 = vector.load %arg8[%c0_5, %c0_6] : memref<40x32xf32, #tpu.memory_space<vmem>>, vector<32x32xf32>
    tpu.vector_store %arg8[%c0_5, %c0_6], %7 {strides = array<i32>} : memref<40x32xf32, #tpu.memory_space<vmem>>, vector<32x32xf32>,
    %c0_7 = arith.constant 0 : index
    %c0_8 = arith.constant 0 : index
    %11 = vector.load %arg8[%c0_7, %c0_8] : memref<40x32xf32, #tpu.memory_space<vmem>>, vector<32x32xf32>
    %c0_9 = arith.constant 0 : index
    %c0_10 = arith.constant 0 : index
    %12 = vector.load %arg9[%c0_9, %c0_10] : memref<32x160xf32, #tpu.memory_space<vmem>>, vector<32x32xf32>
    tpu.vector_store %arg9[%c0_9, %c0_10], %11 {strides = array<i32>} : memref<32x160xf32, #tpu.memory_space<vmem>>, vector<32x32xf32>,
    %c1 = arith.constant 1 : index
    %c0_11 = arith.constant 0 : index
    %13 = vector.load %arg8[%c1, %c0_11] : memref<40x32xf32, #tpu.memory_space<vmem>>, vector<32x32xf32>
    %c0_12 = arith.constant 0 : index
    %c32_13 = arith.constant 32 : index
    %14 = vector.load %arg9[%c0_12, %c32_13] : memref<32x160xf32, #tpu.memory_space<vmem>>, vector<32x32xf32>
    tpu.vector_store %arg9[%c0_12, %c32_13], %13 {strides = array<i32>} : memref<32x160xf32, #tpu.memory_space<vmem>>, vector<32x32xf32>,
    %c2 = arith.constant 2 : index
    %c0_14 = arith.constant 0 : index
    %15 = vector.load %arg8[%c2, %c0_14] : memref<40x32xf32, #tpu.memory_space<vmem>>, vector<32x32xf32>
    %c0_15 = arith.constant 0 : index
    %c64 = arith.constant 64 : index
    %16 = vector.load %arg9[%c0_15, %c64] : memref<32x160xf32, #tpu.memory_space<vmem>>, vector<32x32xf32>
    tpu.vector_store %arg9[%c0_15, %c64], %15 {strides = array<i32>} : memref<32x160xf32, #tpu.memory_space<vmem>>, vector<32x32xf32>,
    %c3 = arith.constant 3 : index
    %c0_16 = arith.constant 0 : index
    %17 = vector.load %arg8[%c3, %c0_16] : memref<40x32xf32, #tpu.memory_space<vmem>>, vector<32x32xf32>
    %c0_17 = arith.constant 0 : index
    %c96 = arith.constant 96 : index
    %18 = vector.load %arg9[%c0_17, %c96] : memref<32x160xf32, #tpu.memory_space<vmem>>, vector<32x32xf32>
    tpu.vector_store %arg9[%c0_17, %c96], %17 {strides = array<i32>} : memref<32x160xf32, #tpu.memory_space<vmem>>, vector<32x32xf32>,
    %c4 = arith.constant 4 : index
    %c0_18 = arith.constant 0 : index
    %19 = vector.load %arg8[%c4, %c0_18] : memref<40x32xf32, #tpu.memory_space<vmem>>, vector<32x32xf32>
    %c0_19 = arith.constant 0 : index
    %c128 = arith.constant 128 : index
    %20 = vector.load %arg9[%c0_19, %c128] : memref<32x160xf32, #tpu.memory_space<vmem>>, vector<32x32xf32>
    tpu.vector_store %arg9[%c0_19, %c128], %19 {strides = array<i32>} : memref<32x160xf32, #tpu.memory_space<vmem>>, vector<32x32xf32>,
    %c0_20 = arith.constant 0 : index
    %c0_21 = arith.constant 0 : index
    %21 = vector.load %arg9[%c0_20, %c0_21] : memref<32x160xf32, #tpu.memory_space<vmem>>, vector<32x160xf32>
    %22 = arith.truncf %21 : vector<32x160xf32> to vector<32x160xbf16>
    %c0_22 = arith.constant 0 : index
    %c0_23 = arith.constant 0 : index
    %23 = vector.load %arg2[%c0_22, %c0_23] : memref<160x640xbf16, #tpu.memory_space<vmem>>, vector<160x640xbf16>
    %cst_24 = arith.constant dense<0.000000e+00> : vector<32x640xf32>
    %24 = tpu.matmul %22, %23, %cst_24 {dimension_numbers = #tpu.dot_dimension_numbers<[1], [0], [0], [1], [0, 0, 1, 1], [], []>} : vector<32x160xbf16>, vector<160x640xbf16>, vector<32x640xf32> -> vector<32x640xf32>
    %c0_25 = arith.constant 0 : index
    %c0_26 = arith.constant 0 : index
    %25 = vector.load %arg3[%c0_25, %c0_26] : memref<1x640xf32, #tpu.memory_space<vmem>>, vector<1x640xf32>
    %26 = vector.broadcast %25 : vector<1x640xf32> to vector<32x640xf32>
    %27 = arith.addf %24, %26 : vector<32x640xf32>
    %cst_27 = arith.constant 0.000000e+00 : f32
    %28 = vector.broadcast %cst_27 : f32 to vector<32x640xf32>
    %29 = arith.maximumf %27, %28 : vector<32x640xf32>
    %30 = tpu.iota {dimensions = array<i32: 0>} : vector<16x640xi32>
    %c0_28 = arith.constant 0 : index
    %c0_29 = arith.constant 0 : index
    %31 = vector.load %arg4[%c0_28, %c0_29] : memref<1x640xi32, #tpu.memory_space<vmem>>, vector<1x640xi32>
    %32 = vector.broadcast %31 : vector<1x640xi32> to vector<16x640xi32>
    %33 = arith.cmpi slt, %30, %32 : vector<16x640xi32>
    %34 = arith.extui %33 : vector<16x640xi1> to vector<16x640xi32>
    %35 = arith.sitofp %34 : vector<16x640xi32> to vector<16x640xf32>
    %36 = vector.shape_cast %29 : vector<32x640xf32> to vector<2x16x640xf32>
    %37 = vector.shape_cast %35 : vector<16x640xf32> to vector<1x16x640xf32>
    %38 = vector.broadcast %37 : vector<1x16x640xf32> to vector<2x16x640xf32>
    %39 = arith.mulf %36, %38 : vector<2x16x640xf32>
    %cst_30 = arith.constant dense<0xFF800000> : vector<2x640xf32>
    %40 = vector.multi_reduction <maximumf>, %39, %cst_30 [1] : vector<2x16x640xf32> to vector<2x640xf32>
    %41 = arith.truncf %40 : vector<2x640xf32> to vector<2x640xbf16>
    %c0_31 = arith.constant 0 : index
    %c0_32 = arith.constant 0 : index
    %42 = vector.load %arg5[%c0_31, %c0_32] : memref<640x128xbf16, #tpu.memory_space<vmem>>, vector<640x128xbf16>
    %cst_33 = arith.constant dense<0.000000e+00> : vector<2x128xf32>
    %43 = tpu.matmul %41, %42, %cst_33 {dimension_numbers = #tpu.dot_dimension_numbers<[1], [0], [0], [1], [0, 0, 1, 1], [], []>} : vector<2x640xbf16>, vector<640x128xbf16>, vector<2x128xf32> -> vector<2x128xf32>
    %c0_34 = arith.constant 0 : index
    %c0_35 = arith.constant 0 : index
    %44 = vector.load %arg6[%c0_34, %c0_35] : memref<1x128xf32, #tpu.memory_space<vmem>>, vector<1x128xf32>
    %45 = vector.broadcast %44 : vector<1x128xf32> to vector<2x128xf32>
    %46 = arith.addf %43, %45 : vector<2x128xf32>
    %c0_36 = arith.constant 0 : index
    %c0_37 = arith.constant 0 : index
    %47 = vector.load %arg7[%c0_36, %c0_37] : memref<2x128xf32, #tpu.memory_space<vmem>>, vector<2x128xf32>
    tpu.vector_store %arg7[%c0_36, %c0_37], %46 {strides = array<i32>} : memref<2x128xf32, #tpu.memory_space<vmem>>, vector<2x128xf32>,
    return
  }
}

</mosaic_0001>

<llo_original>
// kernel: textcnn_forward.1
$region0: #{textcnn_forward.1}
  #allocation0 [shape = 'u32[]', space=smem, size = 0x4, offset = 0x4, fixed_abs, tag = 'smem constant byte address 0x4 - core index']
  #allocation1 [shape = 'u32[144,128]{1,0:T(1,128)}', space=vmem, size = 0x12000, scoped, tag = 'internal scratch']
  #allocation2 [shape = 'f32[40,32]{1,0:T(8,128)}', space=vmem, size = 0x5000, scoped, tag = 'scratch operand']
  #allocation3 [shape = 'f32[32,160]{1,0:T(8,128)}', space=vmem, size = 0x8000, scoped, tag = 'scratch operand']
  %s0 = inlined_call_operand.vmem [shape: s32[32,1], index: 0, kind: input, shape index: {}]
  %s1 = inlined_call_operand.vmem [shape: f32[64,32], index: 1, kind: input, shape index: {}]
  %s2 = inlined_call_operand.hbm [shape: bf16[160,640], index: 2, kind: input, shape index: {}]
  %s3 = inlined_call_operand.vmem [shape: f32[1,640], index: 3, kind: input, shape index: {}]
  %s4 = inlined_call_operand.vmem [shape: s32[1,640], index: 4, kind: input, shape index: {}]
  %s5 = inlined_call_operand.hbm [shape: bf16[640,128], index: 5, kind: input, shape index: {}]
  %s6 = inlined_call_operand.vmem [shape: f32[1,128], index: 6, kind: input, shape index: {}]
  %s7 = inlined_call_operand.hbm [shape: f32[2,128], index: 7, kind: output, shape index: {}]
  %s8 = sld [smem:[#allocation0]]
  $region46: #{textcnn_forward.1} parent=0
    _
  %s10 = ssub.s32 1, %s8
  %s11 = scalar_select 0, %s10, %s8
  $region1: #{textcnn_forward.1} parent=0
    #allocation4 [shape = 'u8[204800]{0}', space=vmem, size = 0x32000, scoped, tag = 'input window, operand 2, single buffered']
    #allocation5 [shape = 's32[1]{0}', space=sflag, size = 0x4, scoped, tag = 'scoped memory for textcnn_forward.1']
    #allocation6 [shape = 's32[1]{0}', space=sflag, size = 0x4, scoped, tag = 'scoped memory for textcnn_forward.1']
    #allocation7 [shape = 'u8[163840]{0}', space=vmem, size = 0x28000, scoped, tag = 'input window, operand 5, single buffered']
    #allocation8 [shape = 's32[1]{0}', space=sflag, size = 0x4, scoped, tag = 'scoped memory for textcnn_forward.1']
    #allocation9 [shape = 'u8[1024]{0}', space=vmem, size = 0x400, scoped, tag = 'output window, operand 0, single buffered']
    %12 = vsyncpa [#allocation5], 0
    %13 = vsyncpa [#allocation8], 0
    %14 = vsyncpa [#allocation6], 0
    // Predicated region
    $region2: #{textcnn_forward.1} parent=1 // pred_check
      _
    $region3: #{textcnn_forward.1} parent=1 // pred_check_branch
      %16 = sbr.rel (0) target = $region5
    $region4: #{textcnn_forward.1} parent=1 // pred_region
      _
    $region5: #{textcnn_forward.1} parent=1 // pred_fallthru
      _
    // Predicated region
    $region6: #{textcnn_forward.1} parent=1 // pred_check
      _
    $region7: #{textcnn_forward.1} parent=1 // pred_check_branch
      %18 = sbr.rel (0) target = $region9
    $region8: #{textcnn_forward.1} parent=1 // pred_region
      _
    $region9: #{textcnn_forward.1} parent=1 // pred_fallthru
      _
    // Predicated region
    $region10: #{textcnn_forward.1} parent=1 // pred_check
      _
    $region11: #{textcnn_forward.1} parent=1 // pred_check_branch
      %20 = sbr.rel (0) target = $region13
    $region12: #{textcnn_forward.1} parent=1 // pred_region
      %s22 = ssub.s32 6400, 6400
      %23 = vsyncadd [#allocation5], %s22
      %s24 = sshll.u32 [#allocation4], 4
      %s25 = int_to_ptr.vmem [resolvable:$true] %s24
      %30 = dma.hbm_to_vmem [thread:$0]  %s2, 6400, %s25, [#allocation5], 320, 320, 20
    $region13: #{textcnn_forward.1} parent=1 // pred_fallthru
      _
    // Predicated region
    $region14: #{textcnn_forward.1} parent=1 // pred_check
      _
    $region15: #{textcnn_forward.1} parent=1 // pred_check_branch
      %32 = sbr.rel (0) target = $region17
    $region16: #{textcnn_forward.1} parent=1 // pred_region
      _
    $region17: #{textcnn_forward.1} parent=1 // pred_fallthru
      _
    // Predicated region
    $region18: #{textcnn_forward.1} parent=1 // pred_check
      _
    $region19: #{textcnn_forward.1} parent=1 // pred_check_branch
      %34 = sbr.rel (0) target = $region21
    $region20: #{textcnn_forward.1} parent=1 // pred_region
      _
    $region21: #{textcnn_forward.1} parent=1 // pred_fallthru
      _
    // Predicated region
    $region22: #{textcnn_forward.1} parent=1 // pred_check
      _
    $region23: #{textcnn_forward.1} parent=1 // pred_check_branch
      %36 = sbr.rel (0) target = $region25
    $region24: #{textcnn_forward.1} parent=1 // pred_region
      %s38 = ssub.s32 5120, 5120
      %39 = vsyncadd [#allocation8], %s38
      %s40 = sshll.u32 [#allocation7], 4
      %s41 = int_to_ptr.vmem [resolvable:$true] %s40
      %46 = dma.hbm_to_vmem [thread:$0]  %s5, 5120, %s41, [#allocation8], 64, 64, 4
    $region25: #{textcnn_forward.1} parent=1 // pred_fallthru
      _
    // Predicated region
    $region26: #{textcnn_forward.1} parent=1 // pred_check
      _
    $region27: #{textcnn_forward.1} parent=1 // pred_check_branch
      %48 = sbr.rel (0) target = $region29
    $region28: #{textcnn_forward.1} parent=1 // pred_region
      _
    $region29: #{textcnn_forward.1} parent=1 // pred_fallthru
      _
    // Predicated region
    $region30: #{textcnn_forward.1} parent=1 // pred_check
      _
    $region31: #{textcnn_forward.1} parent=1 // pred_check_branch
      %50 = sbr.rel (0) target = $region33
    $region32: #{textcnn_forward.1} parent=1 // pred_region
      %51 = dma.done [#allocation5], 6400
    $region33: #{textcnn_forward.1} parent=1 // pred_fallthru
      _
    // Predicated region
    $region34: #{textcnn_forward.1} parent=1 // pred_check
      _
    $region35: #{textcnn_forward.1} parent=1 // pred_check_branch
      %53 = sbr.rel (0) target = $region37
    $region36: #{textcnn_forward.1} parent=1 // pred_region
      %54 = dma.done [#allocation8], 5120
    $region37: #{textcnn_forward.1} parent=1 // pred_fallthru
      _
    %v56 = vld [vmem:[%s0] sm:$0xff]
    %v57 = vld [vmem:[%s0 + $0x8] sm:$0xff]
    %v58 = vld [vmem:[%s0 + $0x10] sm:$0xff]
    %v59 = vld [vmem:[%s0 + $0x18] sm:$0xff]
    %v60 = vlaneseq
    %v61 = vand.u32 %v60, 127
    %62 = vset.pattern.permute.xlu0 0
    %63 = vperm.xlu0 %62, %v56
    %v64 = vpop.permute.xlu0 %63
    %65 = vset.pattern.permute.xlu0 0
    %66 = vperm.xlu0 %65, %v57
    %v67 = vpop.permute.xlu0 %66
    %68 = vset.pattern.permute.xlu0 0
    %69 = vperm.xlu0 %68, %v58
    %v70 = vpop.permute.xlu0 %69
    %71 = vset.pattern.permute.xlu0 0
    %72 = vperm.xlu0 %71, %v59
    %v73 = vpop.permute.xlu0 %72
    %vm74 = vcmp.eq.s32.totalorder %v64, %v61
    %vm75 = vcmp.eq.s32.totalorder %v67, %v61
    %vm76 = vcmp.eq.s32.totalorder %v70, %v61
    %vm77 = vcmp.eq.s32.totalorder %v73, %v61
    %v78 = vsel %vm74, 1, 0
    %v79 = vsel %vm75, 1, 0
    %v80 = vsel %vm76, 1, 0
    %v81 = vsel %vm77, 1, 0
    %v82 = vcvt.s32.f32 %v78
    %v83 = vcvt.s32.f32 %v79
    %v84 = vcvt.s32.f32 %v80
    %v85 = vcvt.s32.f32 %v81
    %v86 = vld [vmem:[%s1] sm:$0xff]
    %v87 = vld [vmem:[%s1 + $0x8] sm:$0xff]
    %v88 = vld [vmem:[%s1 + $0x10] sm:$0xff]
    %v89 = vld [vmem:[%s1 + $0x18] sm:$0xff]
    %v90 = vld [vmem:[%s1 + $0x20] sm:$0xff]
    %v91 = vld [vmem:[%s1 + $0x28] sm:$0xff]
    %v92 = vld [vmem:[%s1 + $0x30] sm:$0xff]
    %v93 = vld [vmem:[%s1 + $0x38] sm:$0xff]
    %vm94 = vcmask 523264
    %v96 = vsel %vm94, %v82, 0
    %v99 = vsel %vm94, %v83, 0
    %v102 = vsel %vm94, %v84, 0
    %v105 = vsel %vm94, %v85, 0
    %107 = vmatprep.subr.mxu0 0.0
    %108 = vmatpush1.msra.mxu0 0.0
    %109 = vmatprep.subr.mxu0 0.0
    %110 = vmatpush1.msra.mxu0 0.0
    %111 = vmatprep.subr.mxu0 0.0
    %112 = vmatpush1.msra.mxu0 0.0
    %113 = vmatprep.subr.mxu0 0.0
    %114 = vmatpush1.msra.mxu0 0.0
    %115 = vmatprep.subr.mxu0 0.0
    %116 = vmatpush1.msra.mxu0 0.0
    %117 = vmatprep.subr.mxu0 0.0
    %118 = vmatpush1.msra.mxu0 0.0
    %119 = vmatprep.subr.mxu0 0.0
    %120 = vmatpush1.msra.mxu0 0.0
    %121 = vmatprep.subr.mxu0 0.0
    %122 = vmatpush1.msra.mxu0 0.0
    %123 = vmatprep.subr.mxu0 0.0
    %124 = vmatpush1.msra.mxu0 %v93
    %125 = vmatprep.subr.mxu0 0.0
    %126 = vmatpush1.msra.mxu0 %v92
    %127 = vmatprep.subr.mxu0 0.0
    %128 = vmatpush1.msra.mxu0 %v91
    %129 = vmatprep.subr.mxu0 0.0
    %130 = vmatpush1.msra.mxu0 %v90
    %131 = vmatprep.subr.mxu0 0.0
    %132 = vmatpush1.msra.mxu0 %v89
    %133 = vmatprep.subr.mxu0 0.0
    %134 = vmatpush1.msra.mxu0 %v88
    %135 = vmatprep.subr.mxu0 0.0
    %136 = vmatpush1.msra.mxu0 %v87
    %137 = vmatprep.subr.mxu0 0.0
    %138 = vmatpush1.msra.mxu0 %v86
    %139 = vmatprep.subr.mxu0 0.0
    %140 = vmatpush2.msra.mxu0 0.0
    %141 = vmatprep.subr.mxu0 0.0
    %142 = vmatpush2.msra.mxu0 0.0
    %143 = vmatprep.subr.mxu0 0.0
    %144 = vmatpush2.msra.mxu0 0.0
    %145 = vmatprep.subr.mxu0 0.0
    %146 = vmatpush2.msra.mxu0 0.0
    %147 = vmatprep.subr.mxu0 0.0
    %148 = vmatpush2.msra.mxu0 0.0
    %149 = vmatprep.subr.mxu0 0.0
    %150 = vmatpush2.msra.mxu0 0.0
    %151 = vmatprep.subr.mxu0 0.0
    %152 = vmatpush2.msra.mxu0 0.0
    %153 = vmatprep.subr.mxu0 0.0
    %154 = vmatpush2.msra.mxu0 0.0
    %155 = vmatprep.subr.mxu0 0.0
    %156 = vmatpush2.msra.mxu0 0.0
    %157 = vmatprep.subr.mxu0 0.0
    %158 = vmatpush2.msra.mxu0 0.0
    %159 = vmatprep.subr.mxu0 0.0
    %160 = vmatpush2.msra.mxu0 0.0
    %161 = vmatprep.subr.mxu0 0.0
    %162 = vmatpush2.msra.mxu0 0.0
    %163 = vmatprep.subr.mxu0 0.0
    %164 = vmatpush2.msra.mxu0 0.0
    %165 = vmatprep.subr.mxu0 0.0
    %166 = vmatpush2.msra.mxu0 0.0
    %167 = vmatprep.subr.mxu0 0.0
    %168 = vmatpush2.msra.mxu0 0.0
    %169 = vmatprep.subr.mxu0 0.0
    %170 = vmatpush2.msra.mxu0 0.0
    %171 = vmatprep.mubr.f32.mxu0 0.0
    %172 = vmatmul.mubr.f32.gmra.mxu0 %v96
    %v173 = vpop.f32.mrf.mxu0
    %v174 = vadd.f32 0.0, %v173
    %v175 = vpop.f32.mrf.mxu0
    %176 = vmatprep.mubr.f32.mxu0 0.0
    %177 = vmatmul.mubr.f32.gmra.mxu0 %v99
    %v178 = vpop.f32.mrf.mxu0
    %v179 = vadd.f32 0.0, %v178
    %v180 = vpop.f32.mrf.mxu0
    %181 = vmatprep.mubr.f32.mxu0 0.0
    %182 = vmatmul.mubr.f32.gmra.mxu0 %v102
    %v183 = vpop.f32.mrf.mxu0
    %v184 = vadd.f32 0.0, %v183
    %v185 = vpop.f32.mrf.mxu0
    %186 = vmatprep.mubr.f32.mxu0 0.0
    %187 = vmatmul.mubr.f32.gmra.mxu0 %v105
    %v188 = vpop.f32.mrf.mxu0
    %v189 = vadd.f32 0.0, %v188
    %v190 = vpop.f32.mrf.mxu0
    %191 = vdwg.mxu0
    %vm192 = vcmask 261120
    %193 = vst.msk [vmem:[#allocation2 + $0x20] sm:$0xff] %vm192, 0.0
    %194 = vst.msk [vmem:[#allocation2] sm:$0xff] %vm192, %v174
    %195 = vst.msk [vmem:[#allocation2 + $0x8] sm:$0xff] %vm192, %v179
    %196 = vst.msk [vmem:[#allocation2 + $0x10] sm:$0xff] %vm192, %v184
    %197 = vst.msk [vmem:[#allocation2 + $0x18] sm:$0xff] %vm192, %v189
    %v198 = vld [vmem:[#allocation2] sm:$0xff]
    %v199 = vld [vmem:[#allocation2 + $0x8] sm:$0xff]
    %v200 = vld [vmem:[#allocation2 + $0x10] sm:$0xff]
    %v201 = vld [vmem:[#allocation2 + $0x18] sm:$0xff]
    %202 = vst.msk [vmem:[#allocation3] sm:$0xff] %vm192, %v198
    %203 = vst.msk [vmem:[#allocation3 + $0x10] sm:$0xff] %vm192, %v199
    %204 = vst.msk [vmem:[#allocation3 + $0x20] sm:$0xff] %vm192, %v200
    %205 = vst.msk [vmem:[#allocation3 + $0x30] sm:$0xff] %vm192, %v201
    %v206 = vld [vmem:[#allocation2 + $0x1] sm:$0xff]
    %v207 = vld [vmem:[#allocation2 + $0x9] sm:$0xff]
    %v208 = vld [vmem:[#allocation2 + $0x11] sm:$0xff]
    %v209 = vld [vmem:[#allocation2 + $0x19] sm:$0xff]
    %214 = vrot.lane.b32.xlu0 %v206, 32
    %v215 = vpop.permute.xlu0 %214
    %216 = vrot.lane.b32.xlu0 %v207, 32
    %v217 = vpop.permute.xlu0 %216
    %218 = vrot.lane.b32.xlu0 %v208, 32
    %v219 = vpop.permute.xlu0 %218
    %220 = vrot.lane.b32.xlu0 %v209, 32
    %v221 = vpop.permute.xlu0 %220
    %vm226 = vcmask 523520
    %227 = vst.msk [vmem:[#allocation3] sm:$0xff] %vm226, %v215
    %228 = vst.msk [vmem:[#allocation3 + $0x10] sm:$0xff] %vm226, %v217
    %229 = vst.msk [vmem:[#allocation3 + $0x20] sm:$0xff] %vm226, %v219
    %230 = vst.msk [vmem:[#allocation3 + $0x30] sm:$0xff] %vm226, %v221
    %v231 = vld [vmem:[#allocation2 + $0x2] sm:$0xff]
    %v232 = vld [vmem:[#allocation2 + $0xa] sm:$0xff]
    %v233 = vld [vmem:[#allocation2 + $0x12] sm:$0xff]
    %v234 = vld [vmem:[#allocation2 + $0x1a] sm:$0xff]
    %239 = vrot.lane.b32.xlu0 %v231, 64
    %v240 = vpop.permute.xlu0 %239
    %241 = vrot.lane.b32.xlu0 %v232, 64
    %v242 = vpop.permute.xlu0 %241
    %243 = vrot.lane.b32.xlu0 %v233, 64
    %v244 = vpop.permute.xlu0 %243
    %245 = vrot.lane.b32.xlu0 %v234, 64
    %v246 = vpop.permute.xlu0 %245
    %vm251 = vcmask 785920
    %252 = vst.msk [vmem:[#allocation3] sm:$0xff] %vm251, %v240
    %253 = vst.msk [vmem:[#allocation3 + $0x10] sm:$0xff] %vm251, %v242
    %254 = vst.msk [vmem:[#allocation3 + $0x20] sm:$0xff] %vm251, %v244
    %255 = vst.msk [vmem:[#allocation3 + $0x30] sm:$0xff] %vm251, %v246
    %v256 = vld [vmem:[#allocation2 + $0x3] sm:$0xff]
    %v257 = vld [vmem:[#allocation2 + $0xb] sm:$0xff]
    %v258 = vld [vmem:[#allocation2 + $0x13] sm:$0xff]
    %v259 = vld [vmem:[#allocation2 + $0x1b] sm:$0xff]
    %264 = vrot.lane.b32.xlu0 %v256, 96
    %v265 = vpop.permute.xlu0 %264
    %266 = vrot.lane.b32.xlu0 %v257, 96
    %v267 = vpop.permute.xlu0 %266
    %268 = vrot.lane.b32.xlu0 %v258, 96
    %v269 = vpop.permute.xlu0 %268
    %270 = vrot.lane.b32.xlu0 %v259, 96
    %v271 = vpop.permute.xlu0 %270
    %vm276 = vcmask 1048320
    %277 = vst.msk [vmem:[#allocation3] sm:$0xff] %vm276, %v265
    %278 = vst.msk [vmem:[#allocation3 + $0x10] sm:$0xff] %vm276, %v267
    %279 = vst.msk [vmem:[#allocation3 + $0x20] sm:$0xff] %vm276, %v269
    %280 = vst.msk [vmem:[#allocation3 + $0x30] sm:$0xff] %vm276, %v271
    %v281 = vld [vmem:[#allocation2 + $0x4] sm:$0xff]
    %v282 = vld [vmem:[#allocation2 + $0xc] sm:$0xff]
    %v283 = vld [vmem:[#allocation2 + $0x14] sm:$0xff]
    %v284 = vld [vmem:[#allocation2 + $0x1c] sm:$0xff]
    %285 = vst.msk [vmem:[#allocation3 + $0x8] sm:$0xff] %vm192, %v281
    %286 = vst.msk [vmem:[#allocation3 + $0x18] sm:$0xff] %vm192, %v282
    %287 = vst.msk [vmem:[#allocation3 + $0x28] sm:$0xff] %vm192, %v283
    %288 = vst.msk [vmem:[#allocation3 + $0x38] sm:$0xff] %vm192, %v284
    %v289 = vld [vmem:[#allocation3] sm:$0xff]
    %v290 = vld [vmem:[#allocation3 + $0x8] sm:$0xff]
    %v291 = vld [vmem:[#allocation3 + $0x10] sm:$0xff]
    %v292 = vld [vmem:[#allocation3 + $0x18] sm:$0xff]
    %v293 = vld [vmem:[#allocation3 + $0x20] sm:$0xff]
    %v294 = vld [vmem:[#allocation3 + $0x28] sm:$0xff]
    %v295 = vld [vmem:[#allocation3 + $0x30] sm:$0xff]
    %v296 = vld [vmem:[#allocation3 + $0x38] sm:$0xff]
    %v297 = vpack.c.bf16 %v291, %v289
    %v298 = vpack.c.bf16 %v292, %v290
    %v299 = vpack.c.bf16 %v295, %v293
    %v300 = vpack.c.bf16 %v296, %v294
    %v301 = vld [vmem:[#allocation4] sm:$0xff]
    %v302 = vld [vmem:[#allocation4 + $0x8] sm:$0xff]
    %v303 = vld [vmem:[#allocation4 + $0x10] sm:$0xf]
    %v304 = vld [vmem:[#allocation4 + $0x14] sm:$0xff]
    %v305 = vld [vmem:[#allocation4 + $0x1c] sm:$0xff]
    %v306 = vld [vmem:[#allocation4 + $0x24] sm:$0xf]
    %v307 = vld [vmem:[#allocation4 + $0x28] sm:$0xff]
    %v308 = vld [vmem:[#allocation4 + $0x30] sm:$0xff]
    %v309 = vld [vmem:[#allocation4 + $0x38] sm:$0xf]
    %v310 = vld [vmem:[#allocation4 + $0x3c] sm:$0xff]
    %v311 = vld [vmem:[#allocation4 + $0x44] sm:$0xff]
    %v312 = vld [vmem:[#allocation4 + $0x4c] sm:$0xf]
    %v313 = vld [vmem:[#allocation4 + $0x50] sm:$0xff]
    %v314 = vld [vmem:[#allocation4 + $0x58] sm:$0xff]
    %v315 = vld [vmem:[#allocation4 + $0x60] sm:$0xf]
    %v316 = vld [vmem:[#allocation4 + $0x64] sm:$0xff]
    %v317 = vld [vmem:[#allocation4 + $0x6c] sm:$0xff]
    %v318 = vld [vmem:[#allocation4 + $0x74] sm:$0xf]
    %v319 = vld [vmem:[#allocation4 + $0x78] sm:$0xff]
    %v320 = vld [vmem:[#allocation4 + $0x80] sm:$0xff]
    %v321 = vld [vmem:[#allocation4 + $0x88] sm:$0xf]
    %v322 = vld [vmem:[#allocation4 + $0x8c] sm:$0xff]
    %v323 = vld [vmem:[#allocation4 + $0x94] sm:$0xff]
    %v324 = vld [vmem:[#allocation4 + $0x9c] sm:$0xf]
    %v325 = vld [vmem:[#allocation4 + $0xa0] sm:$0xff]
    %v326 = vld [vmem:[#allocation4 + $0xa8] sm:$0xff]
    %v327 = vld [vmem:[#allocation4 + $0xb0] sm:$0xf]
    %v328 = vld [vmem:[#allocation4 + $0xb4] sm:$0xff]
    %v329 = vld [vmem:[#allocation4 + $0xbc] sm:$0xff]
    %v330 = vld [vmem:[#allocation4 + $0xc4] sm:$0xf]
    %v331 = vld [vmem:[#allocation4 + $0xc8] sm:$0xff]
    %v332 = vld [vmem:[#allocation4 + $0xd0] sm:$0xff]
    %v333 = vld [vmem:[#allocation4 + $0xd8] sm:$0xf]
    %v334 = vld [vmem:[#allocation4 + $0xdc] sm:$0xff]
    %v335 = vld [vmem:[#allocation4 + $0xe4] sm:$0xff]
    %v336 = vld [vmem:[#allocation4 + $0xec] sm:$0xf]
    %v337 = vld [vmem:[#allocation4 + $0xf0] sm:$0xff]
    %v338 = vld [vmem:[#allocation4 + $0xf8] sm:$0xff]
    %v339 = vld [vmem:[#allocation4 + $0x100] sm:$0xf]
    %v340 = vld [vmem:[#allocation4 + $0x104] sm:$0xff]
    %v341 = vld [vmem:[#allocation4 + $0x10c] sm:$0xff]
    %v342 = vld [vmem:[#allocation4 + $0x114] sm:$0xf]
    %v343 = vld [vmem:[#allocation4 + $0x118] sm:$0xff]
    %v344 = vld [vmem:[#allocation4 + $0x120] sm:$0xff]
    %v345 = vld [vmem:[#allocation4 + $0x128] sm:$0xf]
    %v346 = vld [vmem:[#allocation4 + $0x12c] sm:$0xff]
    %v347 = vld [vmem:[#allocation4 + $0x134] sm:$0xff]
    %v348 = vld [vmem:[#allocation4 + $0x13c] sm:$0xf]
    %v349 = vld [vmem:[#allocation4 + $0x140] sm:$0xff]
    %v350 = vld [vmem:[#allocation4 + $0x148] sm:$0xff]
    %v351 = vld [vmem:[#allocation4 + $0x150] sm:$0xf]
    %v352 = vld [vmem:[#allocation4 + $0x154] sm:$0xff]
    %v353 = vld [vmem:[#allocation4 + $0x15c] sm:$0xff]
    %v354 = vld [vmem:[#allocation4 + $0x164] sm:$0xf]
    %v355 = vld [vmem:[#allocation4 + $0x168] sm:$0xff]
    %v356 = vld [vmem:[#allocation4 + $0x170] sm:$0xff]
    %v357 = vld [vmem:[#allocation4 + $0x178] sm:$0xf]
    %v358 = vld [vmem:[#allocation4 + $0x17c] sm:$0xff]
    %v359 = vld [vmem:[#allocation4 + $0x184] sm:$0xff]
    %v360 = vld [vmem:[#allocation4 + $0x18c] sm:$0xf]
    %v361 = vld [vmem:[%s3] sm:$0x1f]
    %v363 = vlaneseq
    %v364 = vshrl.u32 %v363, 7
    %v365 = vsub.s32 0, %v364
    %v366 = vrot.slane %v361, %v365
    %v367 = vlaneseq
    %v368 = vshrl.u32 %v367, 7
    %v369 = vsub.s32 1, %v368
    %v370 = vrot.slane %v361, %v369
    %v371 = vlaneseq
    %v372 = vshrl.u32 %v371, 7
    %v373 = vsub.s32 2, %v372
    %v374 = vrot.slane %v361, %v373
    %v375 = vlaneseq
    %v376 = vshrl.u32 %v375, 7
    %v377 = vsub.s32 3, %v376
    %v378 = vrot.slane %v361, %v377
    %v379 = vlaneseq
    %v380 = vshrl.u32 %v379, 7
    %v381 = vsub.s32 4, %v380
    %v382 = vrot.slane %v361, %v381
    %v448 = vunpack.c.l.b16 %v301
    %v449 = vunpack.c.h.b16 %v301
    %v450 = vunpack.c.l.b16 %v302
    %v451 = vunpack.c.h.b16 %v302
    %v452 = vunpack.c.l.b16 %v303
    %v453 = vunpack.c.l.b16 %v304
    %v454 = vunpack.c.h.b16 %v304
    %v455 = vunpack.c.l.b16 %v305
    %v456 = vunpack.c.h.b16 %v305
    %v457 = vunpack.c.l.b16 %v306
    %v458 = vunpack.c.l.b16 %v307
    %v459 = vunpack.c.h.b16 %v307
    %v460 = vunpack.c.l.b16 %v308
    %v461 = vunpack.c.h.b16 %v308
    %v462 = vunpack.c.l.b16 %v309
    %v463 = vunpack.c.l.b16 %v310
    %v464 = vunpack.c.h.b16 %v310
    %v465 = vunpack.c.l.b16 %v311
    %v466 = vunpack.c.h.b16 %v311
    %v467 = vunpack.c.l.b16 %v312
    %v468 = vunpack.c.l.b16 %v313
    %v469 = vunpack.c.h.b16 %v313
    %v470 = vunpack.c.l.b16 %v314
    %v471 = vunpack.c.h.b16 %v314
    %v472 = vunpack.c.l.b16 %v315
    %v473 = vunpack.c.l.b16 %v316
    %v474 = vunpack.c.h.b16 %v316
    %v475 = vunpack.c.l.b16 %v317
    %v476 = vunpack.c.h.b16 %v317
    %v477 = vunpack.c.l.b16 %v318
    %v478 = vunpack.c.l.b16 %v319
    %v479 = vunpack.c.h.b16 %v319
    %v480 = vunpack.c.l.b16 %v320
    %v481 = vunpack.c.h.b16 %v320
    %v482 = vunpack.c.l.b16 %v321
    %v483 = vunpack.c.l.b16 %v322
    %v484 = vunpack.c.h.b16 %v322
    %v485 = vunpack.c.l.b16 %v323
    %v486 = vunpack.c.h.b16 %v323
    %v487 = vunpack.c.l.b16 %v324
    %v488 = vunpack.c.l.b16 %v325
    %v489 = vunpack.c.h.b16 %v325
    %v490 = vunpack.c.l.b16 %v326
    %v491 = vunpack.c.h.b16 %v326
    %v492 = vunpack.c.l.b16 %v327
    %v493 = vunpack.c.l.b16 %v328
    %v494 = vunpack.c.h.b16 %v328
    %v495 = vunpack.c.l.b16 %v329
    %v496 = vunpack.c.h.b16 %v329
    %v497 = vunpack.c.l.b16 %v330
    %v498 = vunpack.c.l.b16 %v331
    %v499 = vunpack.c.h.b16 %v331
    %v500 = vunpack.c.l.b16 %v332
    %v501 = vunpack.c.h.b16 %v332
    %v502 = vunpack.c.l.b16 %v333
    %v503 = vunpack.c.l.b16 %v334
    %v504 = vunpack.c.h.b16 %v334
    %v505 = vunpack.c.l.b16 %v335
    %v506 = vunpack.c.h.b16 %v335
    %v507 = vunpack.c.l.b16 %v336
    %v508 = vunpack.c.l.b16 %v337
    %v509 = vunpack.c.h.b16 %v337
    %v510 = vunpack.c.l.b16 %v338
    %v511 = vunpack.c.h.b16 %v338
    %v512 = vunpack.c.l.b16 %v339
    %v513 = vunpack.c.l.b16 %v340
    %v514 = vunpack.c.h.b16 %v340
    %v515 = vunpack.c.l.b16 %v341
    %v516 = vunpack.c.h.b16 %v341
    %v517 = vunpack.c.l.b16 %v342
    %v518 = vunpack.c.l.b16 %v343
    %v519 = vunpack.c.h.b16 %v343
    %v520 = vunpack.c.l.b16 %v344
    %v521 = vunpack.c.h.b16 %v344
    %v522 = vunpack.c.l.b16 %v345
    %v523 = vunpack.c.l.b16 %v346
    %v524 = vunpack.c.h.b16 %v346
    %v525 = vunpack.c.l.b16 %v347
    %v526 = vunpack.c.h.b16 %v347
    %v527 = vunpack.c.l.b16 %v348
    %v528 = vunpack.c.l.b16 %v349
    %v529 = vunpack.c.h.b16 %v349
    %v530 = vunpack.c.l.b16 %v350
    %v531 = vunpack.c.h.b16 %v350
    %v532 = vunpack.c.l.b16 %v351
    %v533 = vunpack.c.l.b16 %v352
    %v534 = vunpack.c.h.b16 %v352
    %v535 = vunpack.c.l.b16 %v353
    %v536 = vunpack.c.h.b16 %v353
    %v537 = vunpack.c.l.b16 %v354
    %v538 = vunpack.c.l.b16 %v355
    %v539 = vunpack.c.h.b16 %v355
    %v540 = vunpack.c.l.b16 %v356
    %v541 = vunpack.c.h.b16 %v356
    %v542 = vunpack.c.l.b16 %v357
    %v543 = vunpack.c.l.b16 %v358
    %v544 = vunpack.c.h.b16 %v358
    %v545 = vunpack.c.l.b16 %v359
    %v546 = vunpack.c.h.b16 %v359
    %v547 = vunpack.c.l.b16 %v360
    %v548 = vpack.c.b16 %v453, %v448
    %v549 = vpack.c.b16 %v454, %v449
    %v550 = vpack.c.b16 %v455, %v450
    %v551 = vpack.c.b16 %v456, %v451
    %v552 = vpack.c.b16 %v457, %v452
    %v553 = vpack.c.b16 %v463, %v458
    %v554 = vpack.c.b16 %v464, %v459
    %v555 = vpack.c.b16 %v465, %v460
    %v556 = vpack.c.b16 %v466, %v461
    %v557 = vpack.c.b16 %v467, %v462
    %v558 = vpack.c.b16 %v473, %v468
    %v559 = vpack.c.b16 %v474, %v469
    %v560 = vpack.c.b16 %v475, %v470
    %v561 = vpack.c.b16 %v476, %v471
    %v562 = vpack.c.b16 %v477, %v472
    %v563 = vpack.c.b16 %v483, %v478
    %v564 = vpack.c.b16 %v484, %v479
    %v565 = vpack.c.b16 %v485, %v480
    %v566 = vpack.c.b16 %v486, %v481
    %v567 = vpack.c.b16 %v487, %v482
    %v568 = vpack.c.b16 %v493, %v488
    %v569 = vpack.c.b16 %v494, %v489
    %v570 = vpack.c.b16 %v495, %v490
    %v571 = vpack.c.b16 %v496, %v491
    %v572 = vpack.c.b16 %v497, %v492
    %v573 = vpack.c.b16 %v503, %v498
    %v574 = vpack.c.b16 %v504, %v499
    %v575 = vpack.c.b16 %v505, %v500
    %v576 = vpack.c.b16 %v506, %v501
    %v577 = vpack.c.b16 %v507, %v502
    %v578 = vpack.c.b16 %v513, %v508
    %v579 = vpack.c.b16 %v514, %v509
    %v580 = vpack.c.b16 %v515, %v510
    %v581 = vpack.c.b16 %v516, %v511
    %v582 = vpack.c.b16 %v517, %v512
    %v583 = vpack.c.b16 %v523, %v518
    %v584 = vpack.c.b16 %v524, %v519
    %v585 = vpack.c.b16 %v525, %v520
    %v586 = vpack.c.b16 %v526, %v521
    %v587 = vpack.c.b16 %v527, %v522
    %v588 = vpack.c.b16 %v533, %v528
    %v589 = vpack.c.b16 %v534, %v529
    %v590 = vpack.c.b16 %v535, %v530
    %v591 = vpack.c.b16 %v536, %v531
    %v592 = vpack.c.b16 %v537, %v532
    %v593 = vpack.c.b16 %v543, %v538
    %v594 = vpack.c.b16 %v544, %v539
    %v595 = vpack.c.b16 %v545, %v540
    %v596 = vpack.c.b16 %v546, %v541
    %v597 = vpack.c.b16 %v547, %v542
    %v649 = vsel %vm192, %v298, 0
    %v652 = vsel %vm192, %v300, 0
    %654 = vmatprep.subr.bf16.mxu0 %v584
    %655 = vmatpush1.bf16.msra.mxu0 %v583
    %656 = vmatprep.subr.bf16.mxu0 %v579
    %657 = vmatpush1.bf16.msra.mxu0 %v578
    %658 = vmatprep.subr.bf16.mxu0 %v574
    %659 = vmatpush1.bf16.msra.mxu0 %v573
    %660 = vmatprep.subr.bf16.mxu0 %v569
    %661 = vmatpush1.bf16.msra.mxu0 %v568
    %662 = vmatprep.subr.bf16.mxu0 %v564
    %663 = vmatpush1.bf16.msra.mxu0 %v563
    %664 = vmatprep.subr.bf16.mxu0 %v559
    %665 = vmatpush1.bf16.msra.mxu0 %v558
    %666 = vmatprep.subr.bf16.mxu0 %v554
    %667 = vmatpush1.bf16.msra.mxu0 %v553
    %668 = vmatprep.subr.bf16.mxu0 %v549
    %669 = vmatpush1.bf16.msra.mxu0 %v548
    %670 = vmatprep.subr.bf16.mxu0 0
    %671 = vmatpush2.bf16.msra.mxu0 0
    %672 = vmatprep.subr.bf16.mxu0 0
    %673 = vmatpush2.bf16.msra.mxu0 0
    %674 = vmatprep.subr.bf16.mxu0 0
    %675 = vmatpush2.bf16.msra.mxu0 0
    %676 = vmatprep.subr.bf16.mxu0 0
    %677 = vmatpush2.bf16.msra.mxu0 0
    %678 = vmatprep.subr.bf16.mxu0 0
    %679 = vmatpush2.bf16.msra.mxu0 0
    %680 = vmatprep.subr.bf16.mxu0 0
    %681 = vmatpush2.bf16.msra.mxu0 0
    %682 = vmatprep.subr.bf16.mxu0 %v594
    %683 = vmatpush2.bf16.msra.mxu0 %v593
    %684 = vmatprep.subr.bf16.mxu0 %v589
    %685 = vmatpush2.bf16.msra.mxu0 %v588
    %686 = vmatprep.mubr.bf16.mxu0 %v649
    %687 = vmatmul.mubr.bf16.gmra.mxu0 %v297
    %v688 = vpop.f32.mrf.mxu0
    %v689 = vadd.f32 %v366, %v688
    %v690 = vpop.f32.mrf.mxu0
    %v691 = vadd.f32 %v370, %v690
    %v692 = vpop.f32.mrf.mxu0
    %v693 = vadd.f32 %v366, %v692
    %v694 = vpop.f32.mrf.mxu0
    %v695 = vadd.f32 %v370, %v694
    %696 = vmatprep.mubr.bf16.mxu0 %v652
    %697 = vmatmul.mubr.bf16.gmra.mxu0 %v299
    %v698 = vpop.f32.mrf.mxu0
    %v699 = vadd.f32 %v366, %v698
    %v700 = vpop.f32.mrf.mxu0
    %v701 = vadd.f32 %v370, %v700
    %v702 = vpop.f32.mrf.mxu0
    %v703 = vadd.f32 %v366, %v702
    %v704 = vpop.f32.mrf.mxu0
    %v705 = vadd.f32 %v370, %v704
    %706 = vdwg.mxu0
    %707 = vmatprep.subr.bf16.mxu0 %v586
    %708 = vmatpush1.bf16.msra.mxu0 %v585
    %709 = vmatprep.subr.bf16.mxu0 %v581
    %710 = vmatpush1.bf16.msra.mxu0 %v580
    %711 = vmatprep.subr.bf16.mxu0 %v576
    %712 = vmatpush1.bf16.msra.mxu0 %v575
    %713 = vmatprep.subr.bf16.mxu0 %v571
    %714 = vmatpush1.bf16.msra.mxu0 %v570
    %715 = vmatprep.subr.bf16.mxu0 %v566
    %716 = vmatpush1.bf16.msra.mxu0 %v565
    %717 = vmatprep.subr.bf16.mxu0 %v561
    %718 = vmatpush1.bf16.msra.mxu0 %v560
    %719 = vmatprep.subr.bf16.mxu0 %v556
    %720 = vmatpush1.bf16.msra.mxu0 %v555
    %721 = vmatprep.subr.bf16.mxu0 %v551
    %722 = vmatpush1.bf16.msra.mxu0 %v550
    %723 = vmatprep.subr.bf16.mxu0 0
    %724 = vmatpush2.bf16.msra.mxu0 0
    %725 = vmatprep.subr.bf16.mxu0 0
    %726 = vmatpush2.bf16.msra.mxu0 0
    %727 = vmatprep.subr.bf16.mxu0 0
    %728 = vmatpush2.bf16.msra.mxu0 0
    %729 = vmatprep.subr.bf16.mxu0 0
    %730 = vmatpush2.bf16.msra.mxu0 0
    %731 = vmatprep.subr.bf16.mxu0 0
    %732 = vmatpush2.bf16.msra.mxu0 0
    %733 = vmatprep.subr.bf16.mxu0 0
    %734 = vmatpush2.bf16.msra.mxu0 0
    %735 = vmatprep.subr.bf16.mxu0 %v596
    %736 = vmatpush2.bf16.msra.mxu0 %v595
    %737 = vmatprep.subr.bf16.mxu0 %v591
    %738 = vmatpush2.bf16.msra.mxu0 %v590
    %739 = vmatprep.mubr.bf16.mxu0 %v649
    %740 = vmatmul.mubr.bf16.gmra.mxu0 %v297
    %v741 = vpop.f32.mrf.mxu0
    %v742 = vadd.f32 %v374, %v741
    %v743 = vpop.f32.mrf.mxu0
    %v744 = vadd.f32 %v378, %v743
    %v745 = vpop.f32.mrf.mxu0
    %v746 = vadd.f32 %v374, %v745
    %v747 = vpop.f32.mrf.mxu0
    %v748 = vadd.f32 %v378, %v747
    %749 = vmatprep.mubr.bf16.mxu0 %v652
    %750 = vmatmul.mubr.bf16.gmra.mxu0 %v299
    %v751 = vpop.f32.mrf.mxu0
    %v752 = vadd.f32 %v374, %v751
    %v753 = vpop.f32.mrf.mxu0
    %v754 = vadd.f32 %v378, %v753
    %v755 = vpop.f32.mrf.mxu0
    %v756 = vadd.f32 %v374, %v755
    %v757 = vpop.f32.mrf.mxu0
    %v758 = vadd.f32 %v378, %v757
    %759 = vdwg.mxu0
    %760 = vmatprep.subr.bf16.mxu0 0
    %761 = vmatpush1.bf16.msra.mxu0 %v587
    %762 = vmatprep.subr.bf16.mxu0 0
    %763 = vmatpush1.bf16.msra.mxu0 %v582
    %764 = vmatprep.subr.bf16.mxu0 0
    %765 = vmatpush1.bf16.msra.mxu0 %v577
    %766 = vmatprep.subr.bf16.mxu0 0
    %767 = vmatpush1.bf16.msra.mxu0 %v572
    %768 = vmatprep.subr.bf16.mxu0 0
    %769 = vmatpush1.bf16.msra.mxu0 %v567
    %770 = vmatprep.subr.bf16.mxu0 0
    %771 = vmatpush1.bf16.msra.mxu0 %v562
    %772 = vmatprep.subr.bf16.mxu0 0
    %773 = vmatpush1.bf16.msra.mxu0 %v557
    %774 = vmatprep.subr.bf16.mxu0 0
    %775 = vmatpush1.bf16.msra.mxu0 %v552
    %776 = vmatprep.subr.bf16.mxu0 0
    %777 = vmatpush2.bf16.msra.mxu0 0
    %778 = vmatprep.subr.bf16.mxu0 0
    %779 = vmatpush2.bf16.msra.mxu0 0
    %780 = vmatprep.subr.bf16.mxu0 0
    %781 = vmatpush2.bf16.msra.mxu0 0
    %782 = vmatprep.subr.bf16.mxu0 0
    %783 = vmatpush2.bf16.msra.mxu0 0
    %784 = vmatprep.subr.bf16.mxu0 0
    %785 = vmatpush2.bf16.msra.mxu0 0
    %786 = vmatprep.subr.bf16.mxu0 0
    %787 = vmatpush2.bf16.msra.mxu0 0
    %788 = vmatprep.subr.bf16.mxu0 0
    %789 = vmatpush2.bf16.msra.mxu0 %v597
    %790 = vmatprep.subr.bf16.mxu0 0
    %791 = vmatpush2.bf16.msra.mxu0 %v592
    %792 = vmatprep.mubr.bf16.mxu0 %v649
    %793 = vmatmul.mubr.bf16.gmra.mxu0 %v297
    %v794 = vpop.f32.mrf.mxu0
    %v795 = vadd.f32 %v382, %v794
    %v796 = vpop.f32.mrf.mxu0
    %v797 = vpop.f32.mrf.mxu0
    %v798 = vadd.f32 %v382, %v797
    %v799 = vpop.f32.mrf.mxu0
    %800 = vmatprep.mubr.bf16.mxu0 %v652
    %801 = vmatmul.mubr.bf16.gmra.mxu0 %v299
    %v802 = vpop.f32.mrf.mxu0
    %v803 = vadd.f32 %v382, %v802
    %v804 = vpop.f32.mrf.mxu0
    %v805 = vpop.f32.mrf.mxu0
    %v806 = vadd.f32 %v382, %v805
    %v807 = vpop.f32.mrf.mxu0
    %808 = vdwg.mxu0
    %v809 = vmax.f32 %v689, 0.0
    %v810 = vmax.f32 %v691, 0.0
    %v811 = vmax.f32 %v742, 0.0
    %v812 = vmax.f32 %v744, 0.0
    %v813 = vmax.f32 %v795, 0.0
    %v814 = vmax.f32 %v693, 0.0
    %v815 = vmax.f32 %v695, 0.0
    %v816 = vmax.f32 %v746, 0.0
    %v817 = vmax.f32 %v748, 0.0
    %v818 = vmax.f32 %v798, 0.0
    %v819 = vmax.f32 %v699, 0.0
    %v820 = vmax.f32 %v701, 0.0
    %v821 = vmax.f32 %v752, 0.0
    %v822 = vmax.f32 %v754, 0.0
    %v823 = vmax.f32 %v803, 0.0
    %v824 = vmax.f32 %v703, 0.0
    %v825 = vmax.f32 %v705, 0.0
    %v826 = vmax.f32 %v756, 0.0
    %v827 = vmax.f32 %v758, 0.0
    %v828 = vmax.f32 %v806, 0.0
    %v829 = vlaneseq
    %v830 = vshrl.u32 %v829, 7
    %v831 = vadd.s32 %v830, 8
    %v832 = vld [vmem:[%s4] sm:$0x1f]
    %v833 = vlaneseq
    %v834 = vshrl.u32 %v833, 7
    %v835 = vsub.s32 0, %v834
    %v836 = vrot.slane %v832, %v835
    %v837 = vlaneseq
    %v838 = vshrl.u32 %v837, 7
    %v839 = vsub.s32 1, %v838
    %v840 = vrot.slane %v832, %v839
    %v841 = vlaneseq
    %v842 = vshrl.u32 %v841, 7
    %v843 = vsub.s32 2, %v842
    %v844 = vrot.slane %v832, %v843
    %v845 = vlaneseq
    %v846 = vshrl.u32 %v845, 7
    %v847 = vsub.s32 3, %v846
    %v848 = vrot.slane %v832, %v847
    %v849 = vlaneseq
    %v850 = vshrl.u32 %v849, 7
    %v851 = vsub.s32 4, %v850
    %v852 = vrot.slane %v832, %v851
    %vm853 = vcmp.lt.s32.totalorder %v830, %v836
    %vm854 = vcmp.lt.s32.totalorder %v830, %v840
    %vm855 = vcmp.lt.s32.totalorder %v830, %v844
    %vm856 = vcmp.lt.s32.totalorder %v830, %v848
    %vm857 = vcmp.lt.s32.totalorder %v830, %v852
    %vm858 = vcmp.lt.s32.totalorder %v831, %v836
    %vm859 = vcmp.lt.s32.totalorder %v831, %v840
    %vm860 = vcmp.lt.s32.totalorder %v831, %v844
    %vm861 = vcmp.lt.s32.totalorder %v831, %v848
    %vm862 = vcmp.lt.s32.totalorder %v831, %v852
    %v863 = vsel %vm853, 1, 0
    %v864 = vsel %vm854, 1, 0
    %v865 = vsel %vm855, 1, 0
    %v866 = vsel %vm856, 1, 0
    %v867 = vsel %vm857, 1, 0
    %v868 = vsel %vm858, 1, 0
    %v869 = vsel %vm859, 1, 0
    %v870 = vsel %vm860, 1, 0
    %v871 = vsel %vm861, 1, 0
    %v872 = vsel %vm862, 1, 0
    %v873 = vcvt.s32.f32 %v863
    %v874 = vcvt.s32.f32 %v864
    %v875 = vcvt.s32.f32 %v865
    %v876 = vcvt.s32.f32 %v866
    %v877 = vcvt.s32.f32 %v867
    %v878 = vcvt.s32.f32 %v868
    %v879 = vcvt.s32.f32 %v869
    %v880 = vcvt.s32.f32 %v870
    %v881 = vcvt.s32.f32 %v871
    %v882 = vcvt.s32.f32 %v872
    %v883 = vmul.f32 %v809, %v873
    %v884 = vmul.f32 %v810, %v874
    %v885 = vmul.f32 %v811, %v875
    %v886 = vmul.f32 %v812, %v876
    %v887 = vmul.f32 %v813, %v877
    %v888 = vmul.f32 %v814, %v878
    %v889 = vmul.f32 %v815, %v879
    %v890 = vmul.f32 %v816, %v880
    %v891 = vmul.f32 %v817, %v881
    %v892 = vmul.f32 %v818, %v882
    %v893 = vmul.f32 %v819, %v873
    %v894 = vmul.f32 %v820, %v874
    %v895 = vmul.f32 %v821, %v875
    %v896 = vmul.f32 %v822, %v876
    %v897 = vmul.f32 %v823, %v877
    %v898 = vmul.f32 %v824, %v878
    %v899 = vmul.f32 %v825, %v879
    %v900 = vmul.f32 %v826, %v880
    %v901 = vmul.f32 %v827, %v881
    %v902 = vmul.f32 %v828, %v882
    %v903 = vmax.f32 %v883, %v888
    %v904 = vrot.slane %v903, 4
    %v905 = vmax.f32 %v903, %v904
    %v906 = vrot.slane %v905, 2
    %v907 = vmax.f32 %v905, %v906
    %v908 = vrot.slane %v907, 1
    %v909 = vmax.f32 %v907, %v908
    %v910 = vmax.f32 %v884, %v889
    %v911 = vrot.slane %v910, 4
    %v912 = vmax.f32 %v910, %v911
    %v913 = vrot.slane %v912, 2
    %v914 = vmax.f32 %v912, %v913
    %v915 = vrot.slane %v914, 1
    %v916 = vmax.f32 %v914, %v915
    %v917 = vmax.f32 %v885, %v890
    %v918 = vrot.slane %v917, 4
    %v919 = vmax.f32 %v917, %v918
    %v920 = vrot.slane %v919, 2
    %v921 = vmax.f32 %v919, %v920
    %v922 = vrot.slane %v921, 1
    %v923 = vmax.f32 %v921, %v922
    %v924 = vmax.f32 %v886, %v891
    %v925 = vrot.slane %v924, 4
    %v926 = vmax.f32 %v924, %v925
    %v927 = vrot.slane %v926, 2
    %v928 = vmax.f32 %v926, %v927
    %v929 = vrot.slane %v928, 1
    %v930 = vmax.f32 %v928, %v929
    %v931 = vmax.f32 %v887, %v892
    %v932 = vrot.slane %v931, 4
    %v933 = vmax.f32 %v931, %v932
    %v934 = vrot.slane %v933, 2
    %v935 = vmax.f32 %v933, %v934
    %v936 = vrot.slane %v935, 1
    %v937 = vmax.f32 %v935, %v936
    %v938 = vmax.f32 %v893, %v898
    %v939 = vrot.slane %v938, 4
    %v940 = vmax.f32 %v938, %v939
    %v941 = vrot.slane %v940, 2
    %v942 = vmax.f32 %v940, %v941
    %v943 = vrot.slane %v942, 1
    %v944 = vmax.f32 %v942, %v943
    %v945 = vmax.f32 %v894, %v899
    %v946 = vrot.slane %v945, 4
    %v947 = vmax.f32 %v945, %v946
    %v948 = vrot.slane %v947, 2
    %v949 = vmax.f32 %v947, %v948
    %v950 = vrot.slane %v949, 1
    %v951 = vmax.f32 %v949, %v950
    %v952 = vmax.f32 %v895, %v900
    %v953 = vrot.slane %v952, 4
    %v954 = vmax.f32 %v952, %v953
    %v955 = vrot.slane %v954, 2
    %v956 = vmax.f32 %v954, %v955
    %v957 = vrot.slane %v956, 1
    %v958 = vmax.f32 %v956, %v957
    %v959 = vmax.f32 %v896, %v901
    %v960 = vrot.slane %v959, 4
    %v961 = vmax.f32 %v959, %v960
    %v962 = vrot.slane %v961, 2
    %v963 = vmax.f32 %v961, %v962
    %v964 = vrot.slane %v963, 1
    %v965 = vmax.f32 %v963, %v964
    %v966 = vmax.f32 %v897, %v902
    %v967 = vrot.slane %v966, 4
    %v968 = vmax.f32 %v966, %v967
    %v969 = vrot.slane %v968, 2
    %v970 = vmax.f32 %v968, %v969
    %v971 = vrot.slane %v970, 1
    %v972 = vmax.f32 %v970, %v971
    %v973 = vpack.c.bf16 %v909, %v909
    %v974 = vpack.c.bf16 %v916, %v916
    %v975 = vpack.c.bf16 %v923, %v923
    %v976 = vpack.c.bf16 %v930, %v930
    %v977 = vpack.c.bf16 %v937, %v937
    %v978 = vpack.c.bf16 %v944, %v944
    %v979 = vpack.c.bf16 %v951, %v951
    %v980 = vpack.c.bf16 %v958, %v958
    %v981 = vpack.c.bf16 %v965, %v965
    %v982 = vpack.c.bf16 %v972, %v972
    %v983 = vld [vmem:[#allocation7] sm:$0xf]
    %v984 = vld [vmem:[#allocation7 + $0x4] sm:$0xf]
    %v985 = vld [vmem:[#allocation7 + $0x8] sm:$0xf]
    %v986 = vld [vmem:[#allocation7 + $0xc] sm:$0xf]
    %v987 = vld [vmem:[#allocation7 + $0x10] sm:$0xf]
    %v988 = vld [vmem:[#allocation7 + $0x14] sm:$0xf]
    %v989 = vld [vmem:[#allocation7 + $0x18] sm:$0xf]
    %v990 = vld [vmem:[#allocation7 + $0x1c] sm:$0xf]
    %v991 = vld [vmem:[#allocation7 + $0x20] sm:$0xf]
    %v992 = vld [vmem:[#allocation7 + $0x24] sm:$0xf]
    %v993 = vld [vmem:[#allocation7 + $0x28] sm:$0xf]
    %v994 = vld [vmem:[#allocation7 + $0x2c] sm:$0xf]
    %v995 = vld [vmem:[#allocation7 + $0x30] sm:$0xf]
    %v996 = vld [vmem:[#allocation7 + $0x34] sm:$0xf]
    %v997 = vld [vmem:[#allocation7 + $0x38] sm:$0xf]
    %v998 = vld [vmem:[#allocation7 + $0x3c] sm:$0xf]
    %v999 = vld [vmem:[#allocation7 + $0x40] sm:$0xf]
    %v1000 = vld [vmem:[#allocation7 + $0x44] sm:$0xf]
    %v1001 = vld [vmem:[#allocation7 + $0x48] sm:$0xf]
    %v1002 = vld [vmem:[#allocation7 + $0x4c] sm:$0xf]
    %v1003 = vld [vmem:[#allocation7 + $0x50] sm:$0xf]
    %v1004 = vld [vmem:[#allocation7 + $0x54] sm:$0xf]
    %v1005 = vld [vmem:[#allocation7 + $0x58] sm:$0xf]
    %v1006 = vld [vmem:[#allocation7 + $0x5c] sm:$0xf]
    %v1007 = vld [vmem:[#allocation7 + $0x60] sm:$0xf]
    %v1008 = vld [vmem:[#allocation7 + $0x64] sm:$0xf]
    %v1009 = vld [vmem:[#allocation7 + $0x68] sm:$0xf]
    %v1010 = vld [vmem:[#allocation7 + $0x6c] sm:$0xf]
    %v1011 = vld [vmem:[#allocation7 + $0x70] sm:$0xf]
    %v1012 = vld [vmem:[#allocation7 + $0x74] sm:$0xf]
    %v1013 = vld [vmem:[#allocation7 + $0x78] sm:$0xf]
    %v1014 = vld [vmem:[#allocation7 + $0x7c] sm:$0xf]
    %v1015 = vld [vmem:[#allocation7 + $0x80] sm:$0xf]
    %v1016 = vld [vmem:[#allocation7 + $0x84] sm:$0xf]
    %v1017 = vld [vmem:[#allocation7 + $0x88] sm:$0xf]
    %v1018 = vld [vmem:[#allocation7 + $0x8c] sm:$0xf]
    %v1019 = vld [vmem:[#allocation7 + $0x90] sm:$0xf]
    %v1020 = vld [vmem:[#allocation7 + $0x94] sm:$0xf]
    %v1021 = vld [vmem:[#allocation7 + $0x98] sm:$0xf]
    %v1022 = vld [vmem:[#allocation7 + $0x9c] sm:$0xf]
    %v1023 = vld [vmem:[#allocation7 + $0xa0] sm:$0xf]
    %v1024 = vld [vmem:[#allocation7 + $0xa4] sm:$0xf]
    %v1025 = vld [vmem:[#allocation7 + $0xa8] sm:$0xf]
    %v1026 = vld [vmem:[#allocation7 + $0xac] sm:$0xf]
    %v1027 = vld [vmem:[#allocation7 + $0xb0] sm:$0xf]
    %v1028 = vld [vmem:[#allocation7 + $0xb4] sm:$0xf]
    %v1029 = vld [vmem:[#allocation7 + $0xb8] sm:$0xf]
    %v1030 = vld [vmem:[#allocation7 + $0xbc] sm:$0xf]
    %v1031 = vld [vmem:[#allocation7 + $0xc0] sm:$0xf]
    %v1032 = vld [vmem:[#allocation7 + $0xc4] sm:$0xf]
    %v1033 = vld [vmem:[#allocation7 + $0xc8] sm:$0xf]
    %v1034 = vld [vmem:[#allocation7 + $0xcc] sm:$0xf]
    %v1035 = vld [vmem:[#allocation7 + $0xd0] sm:$0xf]
    %v1036 = vld [vmem:[#allocation7 + $0xd4] sm:$0xf]
    %v1037 = vld [vmem:[#allocation7 + $0xd8] sm:$0xf]
    %v1038 = vld [vmem:[#allocation7 + $0xdc] sm:$0xf]
    %v1039 = vld [vmem:[#allocation7 + $0xe0] sm:$0xf]
    %v1040 = vld [vmem:[#allocation7 + $0xe4] sm:$0xf]
    %v1041 = vld [vmem:[#allocation7 + $0xe8] sm:$0xf]
    %v1042 = vld [vmem:[#allocation7 + $0xec] sm:$0xf]
    %v1043 = vld [vmem:[#allocation7 + $0xf0] sm:$0xf]
    %v1044 = vld [vmem:[#allocation7 + $0xf4] sm:$0xf]
    %v1045 = vld [vmem:[#allocation7 + $0xf8] sm:$0xf]
    %v1046 = vld [vmem:[#allocation7 + $0xfc] sm:$0xf]
    %v1047 = vld [vmem:[#allocation7 + $0x100] sm:$0xf]
    %v1048 = vld [vmem:[#allocation7 + $0x104] sm:$0xf]
    %v1049 = vld [vmem:[#allocation7 + $0x108] sm:$0xf]
    %v1050 = vld [vmem:[#allocation7 + $0x10c] sm:$0xf]
    %v1051 = vld [vmem:[#allocation7 + $0x110] sm:$0xf]
    %v1052 = vld [vmem:[#allocation7 + $0x114] sm:$0xf]
    %v1053 = vld [vmem:[#allocation7 + $0x118] sm:$0xf]
    %v1054 = vld [vmem:[#allocation7 + $0x11c] sm:$0xf]
    %v1055 = vld [vmem:[#allocation7 + $0x120] sm:$0xf]
    %v1056 = vld [vmem:[#allocation7 + $0x124] sm:$0xf]
    %v1057 = vld [vmem:[#allocation7 + $0x128] sm:$0xf]
    %v1058 = vld [vmem:[#allocation7 + $0x12c] sm:$0xf]
    %v1059 = vld [vmem:[#allocation7 + $0x130] sm:$0xf]
    %v1060 = vld [vmem:[#allocation7 + $0x134] sm:$0xf]
    %v1061 = vld [vmem:[#allocation7 + $0x138] sm:$0xf]
    %v1062 = vld [vmem:[#allocation7 + $0x13c] sm:$0xf]
    %v1063 = vld [vmem:[%s6] sm:$0x1]
    %v1065 = vlaneseq
    %v1066 = vshrl.u32 %v1065, 7
    %v1067 = vsub.s32 0, %v1066
    %v1068 = vrot.slane %v1063, %v1067
    %v1080 = vunpack.c.l.b16 %v973
    %v1081 = vunpack.c.l.b16 %v974
    %v1082 = vunpack.c.l.b16 %v975
    %v1083 = vunpack.c.l.b16 %v976
    %v1084 = vunpack.c.l.b16 %v977
    %v1085 = vunpack.c.l.b16 %v978
    %v1086 = vunpack.c.l.b16 %v979
    %v1087 = vunpack.c.l.b16 %v980
    %v1088 = vunpack.c.l.b16 %v981
    %v1089 = vunpack.c.l.b16 %v982
    %vm1090 = vcmask 1041409
    %v1091 = vsel %vm1090, %v1085, %v1080
    %v1092 = vsel %vm1090, %v1086, %v1081
    %v1093 = vsel %vm1090, %v1087, %v1082
    %v1094 = vsel %vm1090, %v1088, %v1083
    %v1095 = vsel %vm1090, %v1089, %v1084
    %v1096 = vpack.c.b16 %v1091, %v1091
    %v1097 = vpack.c.b16 %v1092, %v1092
    %v1098 = vpack.c.b16 %v1093, %v1093
    %v1099 = vpack.c.b16 %v1094, %v1094
    %v1100 = vpack.c.b16 %v1095, %v1095
    %v1186 = vunpack.c.l.b16 %v983
    %v1187 = vunpack.c.l.b16 %v984
    %v1188 = vunpack.c.l.b16 %v985
    %v1189 = vunpack.c.l.b16 %v986
    %v1190 = vunpack.c.l.b16 %v987
    %v1191 = vunpack.c.l.b16 %v988
    %v1192 = vunpack.c.l.b16 %v989
    %v1193 = vunpack.c.l.b16 %v990
    %v1194 = vunpack.c.l.b16 %v991
    %v1195 = vunpack.c.l.b16 %v992
    %v1196 = vunpack.c.l.b16 %v993
    %v1197 = vunpack.c.l.b16 %v994
    %v1198 = vunpack.c.l.b16 %v995
    %v1199 = vunpack.c.l.b16 %v996
    %v1200 = vunpack.c.l.b16 %v997
    %v1201 = vunpack.c.l.b16 %v998
    %v1202 = vunpack.c.l.b16 %v999
    %v1203 = vunpack.c.l.b16 %v1000
    %v1204 = vunpack.c.l.b16 %v1001
    %v1205 = vunpack.c.l.b16 %v1002
    %v1206 = vunpack.c.l.b16 %v1003
    %v1207 = vunpack.c.l.b16 %v1004
    %v1208 = vunpack.c.l.b16 %v1005
    %v1209 = vunpack.c.l.b16 %v1006
    %v1210 = vunpack.c.l.b16 %v1007
    %v1211 = vunpack.c.l.b16 %v1008
    %v1212 = vunpack.c.l.b16 %v1009
    %v1213 = vunpack.c.l.b16 %v1010
    %v1214 = vunpack.c.l.b16 %v1011
    %v1215 = vunpack.c.l.b16 %v1012
    %v1216 = vunpack.c.l.b16 %v1013
    %v1217 = vunpack.c.l.b16 %v1014
    %v1218 = vunpack.c.l.b16 %v1015
    %v1219 = vunpack.c.l.b16 %v1016
    %v1220 = vunpack.c.l.b16 %v1017
    %v1221 = vunpack.c.l.b16 %v1018
    %v1222 = vunpack.c.l.b16 %v1019
    %v1223 = vunpack.c.l.b16 %v1020
    %v1224 = vunpack.c.l.b16 %v1021
    %v1225 = vunpack.c.l.b16 %v1022
    %v1226 = vunpack.c.l.b16 %v1023
    %v1227 = vunpack.c.l.b16 %v1024
    %v1228 = vunpack.c.l.b16 %v1025
    %v1229 = vunpack.c.l.b16 %v1026
    %v1230 = vunpack.c.l.b16 %v1027
    %v1231 = vunpack.c.l.b16 %v1028
    %v1232 = vunpack.c.l.b16 %v1029
    %v1233 = vunpack.c.l.b16 %v1030
    %v1234 = vunpack.c.l.b16 %v1031
    %v1235 = vunpack.c.l.b16 %v1032
    %v1236 = vunpack.c.l.b16 %v1033
    %v1237 = vunpack.c.l.b16 %v1034
    %v1238 = vunpack.c.l.b16 %v1035
    %v1239 = vunpack.c.l.b16 %v1036
    %v1240 = vunpack.c.l.b16 %v1037
    %v1241 = vunpack.c.l.b16 %v1038
    %v1242 = vunpack.c.l.b16 %v1039
    %v1243 = vunpack.c.l.b16 %v1040
    %v1244 = vunpack.c.l.b16 %v1041
    %v1245 = vunpack.c.l.b16 %v1042
    %v1246 = vunpack.c.l.b16 %v1043
    %v1247 = vunpack.c.l.b16 %v1044
    %v1248 = vunpack.c.l.b16 %v1045
    %v1249 = vunpack.c.l.b16 %v1046
    %v1250 = vunpack.c.l.b16 %v1047
    %v1251 = vunpack.c.l.b16 %v1048
    %v1252 = vunpack.c.l.b16 %v1049
    %v1253 = vunpack.c.l.b16 %v1050
    %v1254 = vunpack.c.l.b16 %v1051
    %v1255 = vunpack.c.l.b16 %v1052
    %v1256 = vunpack.c.l.b16 %v1053
    %v1257 = vunpack.c.l.b16 %v1054
    %v1258 = vunpack.c.l.b16 %v1055
    %v1259 = vunpack.c.l.b16 %v1056
    %v1260 = vunpack.c.l.b16 %v1057
    %v1261 = vunpack.c.l.b16 %v1058
    %v1262 = vunpack.c.l.b16 %v1059
    %v1263 = vunpack.c.l.b16 %v1060
    %v1264 = vunpack.c.l.b16 %v1061
    %v1265 = vunpack.c.l.b16 %v1062
    %v1266 = vpack.c.b16 %v1187, %v1186
    %v1267 = vpack.c.b16 %v1189, %v1188
    %v1268 = vpack.c.b16 %v1191, %v1190
    %v1269 = vpack.c.b16 %v1193, %v1192
    %v1270 = vpack.c.b16 %v1195, %v1194
    %v1271 = vpack.c.b16 %v1197, %v1196
    %v1272 = vpack.c.b16 %v1199, %v1198
    %v1273 = vpack.c.b16 %v1201, %v1200
    %v1274 = vpack.c.b16 %v1203, %v1202
    %v1275 = vpack.c.b16 %v1205, %v1204
    %v1276 = vpack.c.b16 %v1207, %v1206
    %v1277 = vpack.c.b16 %v1209, %v1208
    %v1278 = vpack.c.b16 %v1211, %v1210
    %v1279 = vpack.c.b16 %v1213, %v1212
    %v1280 = vpack.c.b16 %v1215, %v1214
    %v1281 = vpack.c.b16 %v1217, %v1216
    %v1282 = vpack.c.b16 %v1219, %v1218
    %v1283 = vpack.c.b16 %v1221, %v1220
    %v1284 = vpack.c.b16 %v1223, %v1222
    %v1285 = vpack.c.b16 %v1225, %v1224
    %v1286 = vpack.c.b16 %v1227, %v1226
    %v1287 = vpack.c.b16 %v1229, %v1228
    %v1288 = vpack.c.b16 %v1231, %v1230
    %v1289 = vpack.c.b16 %v1233, %v1232
    %v1290 = vpack.c.b16 %v1235, %v1234
    %v1291 = vpack.c.b16 %v1237, %v1236
    %v1292 = vpack.c.b16 %v1239, %v1238
    %v1293 = vpack.c.b16 %v1241, %v1240
    %v1294 = vpack.c.b16 %v1243, %v1242
    %v1295 = vpack.c.b16 %v1245, %v1244
    %v1296 = vpack.c.b16 %v1247, %v1246
    %v1297 = vpack.c.b16 %v1249, %v1248
    %v1298 = vpack.c.b16 %v1251, %v1250
    %v1299 = vpack.c.b16 %v1253, %v1252
    %v1300 = vpack.c.b16 %v1255, %v1254
    %v1301 = vpack.c.b16 %v1257, %v1256
    %v1302 = vpack.c.b16 %v1259, %v1258
    %v1303 = vpack.c.b16 %v1261, %v1260
    %v1304 = vpack.c.b16 %v1263, %v1262
    %v1305 = vpack.c.b16 %v1265, %v1264
    %1346 = vmatprep.subr.bf16.mxu0 0
    %1347 = vmatpush1.bf16.msra.mxu0 %v1273
    %1348 = vmatprep.subr.bf16.mxu0 0
    %1349 = vmatpush1.bf16.msra.mxu0 %v1272
    %1350 = vmatprep.subr.bf16.mxu0 0
    %1351 = vmatpush1.bf16.msra.mxu0 %v1271
    %1352 = vmatprep.subr.bf16.mxu0 0
    %1353 = vmatpush1.bf16.msra.mxu0 %v1270
    %1354 = vmatprep.subr.bf16.mxu0 0
    %1355 = vmatpush1.bf16.msra.mxu0 %v1269
    %1356 = vmatprep.subr.bf16.mxu0 0
    %1357 = vmatpush1.bf16.msra.mxu0 %v1268
    %1358 = vmatprep.subr.bf16.mxu0 0
    %1359 = vmatpush1.bf16.msra.mxu0 %v1267
    %1360 = vmatprep.subr.bf16.mxu0 0
    %1361 = vmatpush1.bf16.msra.mxu0 %v1266
    %1362 = vmatprep.subr.bf16.mxu0 0
    %1363 = vmatpush2.bf16.msra.mxu0 %v1281
    %1364 = vmatprep.subr.bf16.mxu0 0
    %1365 = vmatpush2.bf16.msra.mxu0 %v1280
    %1366 = vmatprep.subr.bf16.mxu0 0
    %1367 = vmatpush2.bf16.msra.mxu0 %v1279
    %1368 = vmatprep.subr.bf16.mxu0 0
    %1369 = vmatpush2.bf16.msra.mxu0 %v1278
    %1370 = vmatprep.subr.bf16.mxu0 0
    %1371 = vmatpush2.bf16.msra.mxu0 %v1277
    %1372 = vmatprep.subr.bf16.mxu0 0
    %1373 = vmatpush2.bf16.msra.mxu0 %v1276
    %1374 = vmatprep.subr.bf16.mxu0 0
    %1375 = vmatpush2.bf16.msra.mxu0 %v1275
    %1376 = vmatprep.subr.bf16.mxu0 0
    %1377 = vmatpush2.bf16.msra.mxu0 %v1274
    %1378 = vmatprep.mubr.bf16.mxu0 %v1097
    %1379 = vmatmul.mubr.bf16.gmra.mxu0 %v1096
    %v1380 = vpop.f32.mrf.mxu0
    %v1381 = vadd.f32 %v1068, %v1380
    %v1382 = vpop.f32.mrf.mxu0
    %v1383 = vpop.f32.mrf.mxu0
    %v1384 = vpop.f32.mrf.mxu0
    %1385 = vdwg.mxu0
    %1386 = vmatprep.subr.bf16.mxu0 0
    %1387 = vmatpush1.bf16.msra.mxu0 %v1289
    %1388 = vmatprep.subr.bf16.mxu0 0
    %1389 = vmatpush1.bf16.msra.mxu0 %v1288
    %1390 = vmatprep.subr.bf16.mxu0 0
    %1391 = vmatpush1.bf16.msra.mxu0 %v1287
    %1392 = vmatprep.subr.bf16.mxu0 0
    %1393 = vmatpush1.bf16.msra.mxu0 %v1286
    %1394 = vmatprep.subr.bf16.mxu0 0
    %1395 = vmatpush1.bf16.msra.mxu0 %v1285
    %1396 = vmatprep.subr.bf16.mxu0 0
    %1397 = vmatpush1.bf16.msra.mxu0 %v1284
    %1398 = vmatprep.subr.bf16.mxu0 0
    %1399 = vmatpush1.bf16.msra.mxu0 %v1283
    %1400 = vmatprep.subr.bf16.mxu0 0
    %1401 = vmatpush1.bf16.msra.mxu0 %v1282
    %1402 = vmatprep.subr.bf16.mxu0 0
    %1403 = vmatpush2.bf16.msra.mxu0 %v1297
    %1404 = vmatprep.subr.bf16.mxu0 0
    %1405 = vmatpush2.bf16.msra.mxu0 %v1296
    %1406 = vmatprep.subr.bf16.mxu0 0
    %1407 = vmatpush2.bf16.msra.mxu0 %v1295
    %1408 = vmatprep.subr.bf16.mxu0 0
    %1409 = vmatpush2.bf16.msra.mxu0 %v1294
    %1410 = vmatprep.subr.bf16.mxu0 0
    %1411 = vmatpush2.bf16.msra.mxu0 %v1293
    %1412 = vmatprep.subr.bf16.mxu0 0
    %1413 = vmatpush2.bf16.msra.mxu0 %v1292
    %1414 = vmatprep.subr.bf16.mxu0 0
    %1415 = vmatpush2.bf16.msra.mxu0 %v1291
    %1416 = vmatprep.subr.bf16.mxu0 0
    %1417 = vmatpush2.bf16.msra.mxu0 %v1290
    %1418 = vmatprep.mubr.bf16.mxu0 %v1099
    %1419 = vmatmul.mubr.bf16.gmra.mxu0 %v1098
    %v1420 = vpop.f32.mrf.mxu0
    %v1421 = vadd.f32 %v1381, %v1420
    %v1422 = vpop.f32.mrf.mxu0
    %v1423 = vpop.f32.mrf.mxu0
    %v1424 = vpop.f32.mrf.mxu0
    %1425 = vdwg.mxu0
    %1426 = vmatprep.subr.bf16.mxu0 0
    %1427 = vmatpush1.bf16.msra.mxu0 %v1305
    %1428 = vmatprep.subr.bf16.mxu0 0
    %1429 = vmatpush1.bf16.msra.mxu0 %v1304
    %1430 = vmatprep.subr.bf16.mxu0 0
    %1431 = vmatpush1.bf16.msra.mxu0 %v1303
    %1432 = vmatprep.subr.bf16.mxu0 0
    %1433 = vmatpush1.bf16.msra.mxu0 %v1302
    %1434 = vmatprep.subr.bf16.mxu0 0
    %1435 = vmatpush1.bf16.msra.mxu0 %v1301
    %1436 = vmatprep.subr.bf16.mxu0 0
    %1437 = vmatpush1.bf16.msra.mxu0 %v1300
    %1438 = vmatprep.subr.bf16.mxu0 0
    %1439 = vmatpush1.bf16.msra.mxu0 %v1299
    %1440 = vmatprep.subr.bf16.mxu0 0
    %1441 = vmatpush1.bf16.msra.mxu0 %v1298
    %1442 = vmatprep.subr.bf16.mxu0 0
    %1443 = vmatpush2.bf16.msra.mxu0 0
    %1444 = vmatprep.subr.bf16.mxu0 0
    %1445 = vmatpush2.bf16.msra.mxu0 0
    %1446 = vmatprep.subr.bf16.mxu0 0
    %1447 = vmatpush2.bf16.msra.mxu0 0
    %1448 = vmatprep.subr.bf16.mxu0 0
    %1449 = vmatpush2.bf16.msra.mxu0 0
    %1450 = vmatprep.subr.bf16.mxu0 0
    %1451 = vmatpush2.bf16.msra.mxu0 0
    %1452 = vmatprep.subr.bf16.mxu0 0
    %1453 = vmatpush2.bf16.msra.mxu0 0
    %1454 = vmatprep.subr.bf16.mxu0 0
    %1455 = vmatpush2.bf16.msra.mxu0 0
    %1456 = vmatprep.subr.bf16.mxu0 0
    %1457 = vmatpush2.bf16.msra.mxu0 0
    %1458 = vmatprep.mubr.bf16.mxu0 0
    %1459 = vmatmul.mubr.bf16.gmra.mxu0 %v1100
    %v1460 = vpop.f32.mrf.mxu0
    %v1461 = vadd.f32 %v1421, %v1460
    %v1462 = vpop.f32.mrf.mxu0
    %v1463 = vpop.f32.mrf.mxu0
    %v1464 = vpop.f32.mrf.mxu0
    %1465 = vdwg.mxu0
    %1466 = vst [vmem:[#allocation9] sm:$0x3] %v1461
    // Predicated region
    $region38: #{textcnn_forward.1} parent=1 // pred_check
      _
    $region39: #{textcnn_forward.1} parent=1 // pred_check_branch
      %1468 = sbr.rel (0) target = $region41
    $region40: #{textcnn_forward.1} parent=1 // pred_region
      %s1470 = ssub.s32 32, 32
      %1471 = vsyncadd [#allocation6], %s1470
      %s1473 = sshll.u32 [#allocation9], 4
      %s1474 = int_to_ptr.vmem [resolvable:$true] %s1473
      %1476 = dma.vmem_to_hbm [thread:$0]  %s1474, 32, %s7, [#allocation6]
    $region41: #{textcnn_forward.1} parent=1 // pred_fallthru
      _
    // Predicated region
    $region42: #{textcnn_forward.1} parent=1 // pred_check
      _
    $region43: #{textcnn_forward.1} parent=1 // pred_check_branch
      %1478 = sbr.rel (0) target = $region45
    $region44: #{textcnn_forward.1} parent=1 // pred_region
      %1479 = dma.done [#allocation6], 32
    $region45: #{textcnn_forward.1} parent=1 // pred_fallthru
      _
    %1480 = vsyncpa [#allocation5], 1
    %1481 = vsyncpa [#allocation8], 1
    %1482 = vsyncpa [#allocation6], 1

</llo_original>
